<compile_context>
chip_gen: v7x
topology: tpu7x:2x2x1
jax: 0.10.0
libtpu: 0.0.40
codegen_flags: <defaults>
</compile_context>

<pallas_src>
import functools
import math

import jax
import jax.numpy as jnp
from jax.experimental import pallas as pl
from jax.experimental.pallas import tpu as pltpu


def _get_pad(size, multiple):
    new_size = math.ceil(size / multiple) * multiple
    pad = new_size - size
    left = pad // 2
    return left, pad - left


def _round_up(x, m):
    return (x + m - 1) // m * m


def _center_pad_kernel(x_ref, o_ref, *, ph_l, ph_r, pw_l, pw_r, h, w):
    """Write each output element exactly once: 4 zero border strips + centre."""
    bc_t = o_ref.shape[0]
    hn = ph_l + h + ph_r
    wn = pw_l + w + pw_r
    dt = o_ref.dtype

    # Top / bottom full-width strips (static slices; skipped if pad == 0).
    if ph_l > 0:
        o_ref[:, 0:ph_l, :] = jnp.zeros((bc_t, ph_l, wn), dt)
    if ph_r > 0:
        o_ref[:, ph_l + h:hn, :] = jnp.zeros((bc_t, ph_r, wn), dt)
    # Left / right strips of the middle rows.
    if pw_l > 0:
        o_ref[:, ph_l:ph_l + h, 0:pw_l] = jnp.zeros((bc_t, h, pw_l), dt)
    if pw_r > 0:
        o_ref[:, ph_l:ph_l + h, pw_l + w:wn] = jnp.zeros((bc_t, h, pw_r), dt)
    # Centre window: the input tile, written once (no prior memset of it).
    o_ref[:, ph_l:ph_l + h, pw_l:pw_l + w] = x_ref[...]


def center_padding(x, multiple):
    """Pallas TPU implementation of CenterPadding.forward for NCHW inputs."""
    if x.ndim != 4:
        # TODO(synk): only the 4-D (N, C, H, W) case is implemented; the PyTorch
        # module pads every dim after dim 1 for arbitrary rank.
        raise NotImplementedError("center_padding: expected a 4-D NCHW tensor")

    b, c, h, w = x.shape
    ph_l, ph_r = _get_pad(h, multiple)
    pw_l, pw_r = _get_pad(w, multiple)
    hn = h + ph_l + ph_r
    wn = w + pw_l + pw_r

    if ph_l == ph_r == pw_l == pw_r == 0:
        # Already a multiple; F.pad with all-zero pads is the identity.
        return x

    bc = b * c
    x3 = x.reshape(bc, h, w)

    # --- Tile sizing from the *layout-padded* VMEM footprint -----------------
    itemsize = x.dtype.itemsize
    sublane = {4: 8, 2: 16, 1: 32}.get(itemsize, 8)
    in_plane = _round_up(h, sublane) * _round_up(w, 128) * itemsize
    out_plane = _round_up(hn, sublane) * _round_up(wn, 128) * itemsize
    plane_bytes = in_plane + out_plane

    # Budget safe on every generation (v7x has only 64 MiB physical per TC);
    # factor 2 accounts for the pipeline's double buffering.
    vmem_budget = 24 * 1024 * 1024
    bc_tile = max(1, min(bc, vmem_budget // max(2 * plane_bytes, 1)))
    # Guarantee >= 2 grid steps when bc >= 2 so the parallel axis can shard
    # across both v7x TensorCores (harmless elsewhere).
    bc_tile = max(1, min(bc_tile, pl.cdiv(bc, 2)))
    # TODO(synk): if a single (in+out) plane already exceeds the budget, H/W
    # tiling would be needed; not relevant at these sizes.

    grid = (pl.cdiv(bc, bc_tile),)  # ragged grid: no divisor search

    in_bytes = bc * h * w * itemsize
    out_bytes = bc * hn * wn * itemsize

    kernel = functools.partial(
        _center_pad_kernel,
        ph_l=ph_l, ph_r=ph_r, pw_l=pw_l, pw_r=pw_r, h=h, w=w)

    out3 = pl.pallas_call(
        kernel,
        out_shape=jax.ShapeDtypeStruct((bc, hn, wn), x.dtype),
        grid=grid,
        in_specs=[pl.BlockSpec((bc_tile, h, w), lambda i: (i, 0, 0))],
        out_specs=pl.BlockSpec((bc_tile, hn, wn), lambda i: (i, 0, 0)),
        compiler_params=pltpu.CompilerParams(
            dimension_semantics=("parallel",),
            vmem_limit_bytes=32 * 1024 * 1024,
        ),
        cost_estimate=pl.CostEstimate(
            flops=0, transcendentals=0, bytes_accessed=in_bytes + out_bytes),
    )(x3)
    return out3.reshape(b, c, hn, wn)


if __name__ == "__main__":
    key = jax.random.PRNGKey(0)
    B, C, H, W = 2, 4, 16, 18   # different H/W to catch axis mix-ups
    MULTIPLE = 7                # -> H: 16->21 pad (2,3); W: 18->21 pad (1,2)

    x = jax.random.normal(key, (B, C, H, W), jnp.float32)

    fwd = jax.jit(functools.partial(center_padding, multiple=MULTIPLE))
    out = jax.block_until_ready(fwd(x))

    # Pure-JAX reference (exactly what torch.nn.functional.pad produces).
    hl, hr = _get_pad(H, MULTIPLE)
    wl, wr = _get_pad(W, MULTIPLE)
    ref = jnp.pad(x, ((0, 0), (0, 0), (hl, hr), (wl, wr)))

    assert out.shape == ref.shape == (B, C, H + hl + hr, W + wl + wr)
    assert bool(jnp.array_equal(out, ref))
    assert bool(jnp.all(jnp.isfinite(out)))

    # Also exercise the identity (no-pad) path.
    x2 = jax.random.normal(key, (B, C, MULTIPLE * 2, MULTIPLE * 3), jnp.float32)
    out2 = jax.block_until_ready(
        jax.jit(functools.partial(center_padding, multiple=MULTIPLE))(x2))
    assert bool(jnp.array_equal(out2, x2))

    print("KERNEL_OK")
</pallas_src>

<mosaic_0001>
module attributes {stable_mosaic.version = 11 : i64} {
  func.func @_center_pad_kernel(%arg0: i32, %arg1: memref<4x16x18xf32, #tpu.memory_space<vmem>>, %arg2: memref<4x21x21xf32, #tpu.memory_space<vmem>>) attributes {dimension_semantics = [#tpu.dimension_semantics<parallel>], iteration_bounds = array<i64: 2>, scalar_prefetch = 0 : i64, scratch_operands = 0 : i64, tpu.core_type = #tpu.core_type<tc>, window_params = [{transform_indices = @transform_0, window_bounds = array<i64: 4, 16, 18>}, {transform_indices = @transform_1, window_bounds = array<i64: 4, 21, 21>}]} {
    %cst = arith.constant 0.000000e+00 : f32
    %0 = vector.broadcast %cst : f32 to vector<4x2x21xf32>
    %c0 = arith.constant 0 : index
    %c0_0 = arith.constant 0 : index
    %c0_1 = arith.constant 0 : index
    %1 = vector.load %arg2[%c0, %c0_0, %c0_1] : memref<4x21x21xf32, #tpu.memory_space<vmem>>, vector<4x2x21xf32>
    tpu.vector_store %arg2[%c0, %c0_0, %c0_1], %0 {strides = array<i32>} : memref<4x21x21xf32, #tpu.memory_space<vmem>>, vector<4x2x21xf32>,
    %cst_2 = arith.constant 0.000000e+00 : f32
    %2 = vector.broadcast %cst_2 : f32 to vector<4x3x21xf32>
    %c0_3 = arith.constant 0 : index
    %c18 = arith.constant 18 : index
    %c0_4 = arith.constant 0 : index
    %3 = vector.load %arg2[%c0_3, %c18, %c0_4] : memref<4x21x21xf32, #tpu.memory_space<vmem>>, vector<4x3x21xf32>
    tpu.vector_store %arg2[%c0_3, %c18, %c0_4], %2 {strides = array<i32>} : memref<4x21x21xf32, #tpu.memory_space<vmem>>, vector<4x3x21xf32>,
    %cst_5 = arith.constant 0.000000e+00 : f32
    %4 = vector.broadcast %cst_5 : f32 to vector<4x16x1xf32>
    %c0_6 = arith.constant 0 : index
    %c2 = arith.constant 2 : index
    %c0_7 = arith.constant 0 : index
    %5 = vector.load %arg2[%c0_6, %c2, %c0_7] : memref<4x21x21xf32, #tpu.memory_space<vmem>>, vector<4x16x1xf32>
    tpu.vector_store %arg2[%c0_6, %c2, %c0_7], %4 {strides = array<i32>} : memref<4x21x21xf32, #tpu.memory_space<vmem>>, vector<4x16x1xf32>,
    %cst_8 = arith.constant 0.000000e+00 : f32
    %6 = vector.broadcast %cst_8 : f32 to vector<4x16x2xf32>
    %c0_9 = arith.constant 0 : index
    %c2_10 = arith.constant 2 : index
    %c19 = arith.constant 19 : index
    %7 = vector.load %arg2[%c0_9, %c2_10, %c19] : memref<4x21x21xf32, #tpu.memory_space<vmem>>, vector<4x16x2xf32>
    tpu.vector_store %arg2[%c0_9, %c2_10, %c19], %6 {strides = array<i32>} : memref<4x21x21xf32, #tpu.memory_space<vmem>>, vector<4x16x2xf32>,
    %c0_11 = arith.constant 0 : index
    %c0_12 = arith.constant 0 : index
    %c0_13 = arith.constant 0 : index
    %8 = vector.load %arg1[%c0_11, %c0_12, %c0_13] : memref<4x16x18xf32, #tpu.memory_space<vmem>>, vector<4x16x18xf32>
    %c0_14 = arith.constant 0 : index
    %c2_15 = arith.constant 2 : index
    %c1 = arith.constant 1 : index
    %9 = vector.load %arg2[%c0_14, %c2_15, %c1] : memref<4x21x21xf32, #tpu.memory_space<vmem>>, vector<4x16x18xf32>
    tpu.vector_store %arg2[%c0_14, %c2_15, %c1], %8 {strides = array<i32>} : memref<4x21x21xf32, #tpu.memory_space<vmem>>, vector<4x16x18xf32>,
    return
  }
  func.func @transform_0(%arg0: i32) -> (i32, i32, i32) {
    %c0_i32 = arith.constant 0 : i32
    %c0_i32_0 = arith.constant 0 : i32
    %c0_i32_1 = arith.constant 0 : i32
    return %arg0, %c0_i32, %c0_i32_0 : i32, i32, i32
  }
  func.func @transform_1(%arg0: i32) -> (i32, i32, i32) {
    %c0_i32 = arith.constant 0 : i32
    %c0_i32_0 = arith.constant 0 : i32
    %c0_i32_1 = arith.constant 0 : i32
    return %arg0, %c0_i32, %c0_i32_0 : i32, i32, i32
  }
}

</mosaic_0001>

<llo_original>
// kernel: center_padding.1
$region0: #{center_padding.1}
  #allocation0 [shape = 'u32[]', space=smem, size = 0x4, offset = 0x4, fixed_abs, tag = 'smem constant byte address 0x4 - core index']
  #allocation1 [shape = 'u32[144,128]{1,0:T(1,128)}', space=vmem, size = 0x12000, scoped, tag = 'internal scratch']
  %s0 = inlined_call_operand.hbm [shape: f32[8,16,18], index: 0, kind: input, shape index: {}]
  %s1 = inlined_call_operand.vmem [shape: f32[8,21,21], index: 1, kind: output, shape index: {}]
  %s2 = sld [smem:[#allocation0]]
  $region41: #{center_padding.1} parent=0
    _
  %s4 = ssub.s32 1, %s2
  %s5 = scalar_select 0, %s4, %s2
  $region1: #{center_padding.1} parent=0
    #allocation2 [shape = 'u8[65536]{0}', space=vmem, size = 0x10000, scoped, tag = 'input window, operand 0']
    #allocation3 [shape = 's32[2]{0}', space=sflag, size = 0x8, scoped, tag = 'scoped memory for center_padding.1']
    %6 = vsyncpa [#allocation3], 0
    %s7 = scalar_lea.sflag [#allocation3], 1
    %8 = vsyncpa %s7, 0
    loop: start=0, step=1, limit=4
    $region2: #{center_padding.1} parent=1 // loop_pre_header
      _
    $region3: #{center_padding.1} parent=1 // loop_header
      %s10 = sphi 0, %s14
      %p11 = scmp.ge.s32.totalorder %s10, 4
      %s20 = sphi 0, %s22
      %s23 = sphi 0, %s20
      %s24 = sphi 0, %s23
      %s40 = sphi 0, %s24
      %s46 = sphi 0, %s48
      %s49 = sphi 0, %s46
      %s50 = sphi 0, %s49
      %s66 = sphi 0, %s50
    $region4: #{center_padding.1} parent=1 // loop_header_branch
      %13 = sbr.rel (%p11) target = $region8
    $region5: #{center_padding.1} parent=1 // loop_body
      %s15 = ssub.s32 %s10, 1
      %s16 = ssub.s32 %s10, 2
      %s17 = sadd.s32 %s10, 1
      %s18 = ssub.s32 %s10, %s17
      %p19 = scmp.eq.s32.totalorder %s18, 0
      %s21 = sadd.s32 %s20, 1
      %s22 = scalar_select %p19, %s20, %s21
      %p25 = pneg %p19
      %p26 = scmp.eq.s32.totalorder %s10, 1
      %p27 = por %p25, %p26
      %p28 = scmp.ne.s32.totalorder %s20, %s23
      %p29 = scmp.eq.s32.totalorder %s10, 0
      %p30 = por %p28, %p29
      %p31 = scmp.ne.s32.totalorder %s20, %s23
      %p32 = scmp.eq.s32.totalorder %s15, 1
      %p33 = por %p31, %p32
      %p34 = scmp.ne.s32.totalorder %s23, %s24
      %p35 = scmp.eq.s32.totalorder %s15, 0
      %p36 = por %p34, %p35
      %p37 = scmp.ne.s32.totalorder %s23, %s24
      %p38 = scmp.eq.s32.totalorder %s16, 1
      %p39 = por %p37, %p38
      %p41 = scmp.ne.s32.totalorder %s24, %s40
      %p42 = scmp.eq.s32.totalorder %s16, 0
      %p43 = por %p41, %p42
      %s44 = ssub.s32 %s10, %s17
      %p45 = scmp.eq.s32.totalorder %s44, 0
      %s47 = sadd.s32 %s46, 1
      %s48 = scalar_select %p45, %s46, %s47
      %p51 = pneg %p45
      %p52 = scmp.eq.s32.totalorder %s10, 1
      %p53 = por %p51, %p52
      %p54 = scmp.ne.s32.totalorder %s46, %s49
      %p55 = scmp.eq.s32.totalorder %s10, 0
      %p56 = por %p54, %p55
      %p57 = scmp.ne.s32.totalorder %s46, %s49
      %p58 = scmp.eq.s32.totalorder %s15, 1
      %p59 = por %p57, %p58
      %p60 = scmp.ne.s32.totalorder %s49, %s50
      %p61 = scmp.eq.s32.totalorder %s15, 0
      %p62 = por %p60, %p61
      %p63 = scmp.ne.s32.totalorder %s49, %s50
      %p64 = scmp.eq.s32.totalorder %s16, 1
      %p65 = por %p63, %p64
      %p67 = scmp.ne.s32.totalorder %s50, %s66
      %p68 = scmp.eq.s32.totalorder %s16, 0
      %p69 = por %p67, %p68
      %p70 = scmp.le.s32.totalorder 1, %s10
      %p71 = scmp.lt.s32.totalorder %s10, 3
      %p72 = pnand %p70, %p71
      %p73 = pneg %p72
      // Predicated region
      $region9: #{center_padding.1} parent=5 // pred_check
        _
      $region10: #{center_padding.1} parent=5 // pred_check_branch
        %75 = sbr.rel (%p72) target = $region12
      $region11: #{center_padding.1} parent=5 // pred_region
        %s76 = ssub.s32 %s10, 1
      $region12: #{center_padding.1} parent=5 // pred_fallthru
        _
      %p77 = scmp.lt.s32.totalorder %s10, 2
      // Predicated region
      $region13: #{center_padding.1} parent=5 // pred_check
        %p78 = pneg %p77
      $region14: #{center_padding.1} parent=5 // pred_check_branch
        %80 = sbr.rel (%p78) target = $region16
      $region15: #{center_padding.1} parent=5 // pred_region
        // Predicated region
        $region17: #{center_padding.1} parent=15 // pred_check
          %p81 = pneg %p30
        $region18: #{center_padding.1} parent=15 // pred_check_branch
          %83 = sbr.rel (%p81) target = $region20
        $region19: #{center_padding.1} parent=15 // pred_region
          %s84 = sand.u32 %s20, 1
          %s85 = scalar_lea.sflag [#allocation3], %s84
          %s86 = sand.u32 %s20, 1
          %s87 = smul.addr %s86, 64
          %s88 = scalar_lea.vmem [#allocation2], %s87
          %s89 = smul.u32 4, %s10
          %s91 = ssub.s32 1024, 1024
          %92 = vsyncadd %s85, %s91
          %s93 = smul.addr %s89, 2
          %s94 = smul.addr %s93, 128
          %s95 = scalar_lea.hbm %s0, %s94
          %s96 = sshll.u32 %s88, 4
          %s97 = int_to_ptr.vmem [resolvable:$true] %s96
          %102 = dma.hbm_to_vmem [thread:$0]  %s95, 1024, %s97, %s85, 128, 128, 8
        $region20: #{center_padding.1} parent=15 // pred_fallthru
          _
      $region16: #{center_padding.1} parent=5 // pred_fallthru
        _
      %p103 = scmp.le.s32.totalorder 1, %s10
      %p104 = scmp.lt.s32.totalorder %s10, 3
      %p105 = pnand %p103, %p104
      %p106 = pneg %p105
      // Predicated region
      $region21: #{center_padding.1} parent=5 // pred_check
        _
      $region22: #{center_padding.1} parent=5 // pred_check_branch
        %108 = sbr.rel (%p105) target = $region24
      $region23: #{center_padding.1} parent=5 // pred_region
        %s109 = ssub.s32 %s10, 1
        %s110 = sand.u32 %s23, 1
        %s111 = scalar_lea.sflag [#allocation3], %s110
        %s112 = sand.u32 %s23, 1
        %s113 = smul.addr %s112, 64
        %s114 = scalar_lea.vmem [#allocation2], %s113
        // Predicated region
        $region25: #{center_padding.1} parent=23 // pred_check
          %p115 = pneg %p36
        $region26: #{center_padding.1} parent=23 // pred_check_branch
          %117 = sbr.rel (%p115) target = $region28
        $region27: #{center_padding.1} parent=23 // pred_region
          %118 = dma.done %s111, 1024
        $region28: #{center_padding.1} parent=23 // pred_fallthru
          _
        %s119 = sand.u32 %s23, 1
        %s120 = scalar_lea.sflag [#allocation3], %s119
        %s121 = sand.u32 %s23, 1
        %s122 = smul.addr %s121, 64
        %s123 = scalar_lea.vmem [#allocation2], %s122
        %p124 = pneg %p36
        %p125 = pneg %p33
        %p126 = pneg %p62
        %p127 = pneg %p59
        %s128 = smul.u32 4, %s15
        %p129 = scmp.lt.s32.totalorder %s128, 7
        %s130 = scalar_select %p129, %s128, 7
        %s131 = smul.addr %s130, 3
        %s132 = smul.addr %s131, 8
        %s133 = scalar_lea.vmem %s1, %s132
        %s134 = smul.u32 4, %s15
        %s135 = smul.u32 4, %s15
        %p136 = scmp.lt.s32.totalorder %s135, 7
        %s137 = scalar_select %p136, %s135, 7
        %s138 = smul.addr %s137, 3
        %s139 = smul.addr %s138, 8
        %s140 = scalar_lea.vmem %s1, %s139
        %s141 = smul.u32 4, %s15
        %vm142 = vcmask 164864
        %143 = vst.msk [vmem:[%s140] sm:$0x3] %vm142, 0.0
        %144 = vst.msk [vmem:[%s140 + $0x18] sm:$0x3] %vm142, 0.0
        %145 = vst.msk [vmem:[%s140 + $0x30] sm:$0x3] %vm142, 0.0
        %146 = vst.msk [vmem:[%s140 + $0x48] sm:$0x3] %vm142, 0.0
        %vm147 = vcmask 165888
        %148 = vst.msk [vmem:[%s140 + $0x12] sm:$0x7] %vm147, 0.0
        %149 = vst.msk [vmem:[%s140 + $0x2a] sm:$0x7] %vm147, 0.0
        %150 = vst.msk [vmem:[%s140 + $0x42] sm:$0x7] %vm147, 0.0
        %151 = vst.msk [vmem:[%s140 + $0x5a] sm:$0x7] %vm147, 0.0
        %vm152 = vcmask 7168
        %153 = vst.msk [vmem:[%s140 + $0x2] sm:$0xff] %vm152, 0.0
        %154 = vst.msk [vmem:[%s140 + $0xa] sm:$0xff] %vm152, 0.0
        %155 = vst.msk [vmem:[%s140 + $0x1a] sm:$0xff] %vm152, 0.0
        %156 = vst.msk [vmem:[%s140 + $0x22] sm:$0xff] %vm152, 0.0
        %157 = vst.msk [vmem:[%s140 + $0x32] sm:$0xff] %vm152, 0.0
        %158 = vst.msk [vmem:[%s140 + $0x3a] sm:$0xff] %vm152, 0.0
        %159 = vst.msk [vmem:[%s140 + $0x4a] sm:$0xff] %vm152, 0.0
        %160 = vst.msk [vmem:[%s140 + $0x52] sm:$0xff] %vm152, 0.0
        %vm161 = vcmask 171160
        %162 = vst.msk [vmem:[%s140 + $0x2] sm:$0xff] %vm161, 0.0
        %163 = vst.msk [vmem:[%s140 + $0xa] sm:$0xff] %vm161, 0.0
        %164 = vst.msk [vmem:[%s140 + $0x1a] sm:$0xff] %vm161, 0.0
        %165 = vst.msk [vmem:[%s140 + $0x22] sm:$0xff] %vm161, 0.0
        %166 = vst.msk [vmem:[%s140 + $0x32] sm:$0xff] %vm161, 0.0
        %167 = vst.msk [vmem:[%s140 + $0x3a] sm:$0xff] %vm161, 0.0
        %168 = vst.msk [vmem:[%s140 + $0x4a] sm:$0xff] %vm161, 0.0
        %169 = vst.msk [vmem:[%s140 + $0x52] sm:$0xff] %vm161, 0.0
        %v170 = vld [vmem:[%s114] sm:$0xff]
        %v171 = vld [vmem:[%s114 + $0x8] sm:$0xff]
        %v172 = vld [vmem:[%s114 + $0x10] sm:$0xff]
        %v173 = vld [vmem:[%s114 + $0x18] sm:$0xff]
        %v174 = vld [vmem:[%s114 + $0x20] sm:$0xff]
        %v175 = vld [vmem:[%s114 + $0x28] sm:$0xff]
        %v176 = vld [vmem:[%s114 + $0x30] sm:$0xff]
        %v177 = vld [vmem:[%s114 + $0x38] sm:$0xff]
        %186 = vrot.lane.b32.xlu0 %v170, 1
        %v187 = vpop.permute.xlu0 %186
        %188 = vrot.lane.b32.xlu0 %v171, 1
        %v189 = vpop.permute.xlu0 %188
        %190 = vrot.lane.b32.xlu0 %v172, 1
        %v191 = vpop.permute.xlu0 %190
        %192 = vrot.lane.b32.xlu0 %v173, 1
        %v193 = vpop.permute.xlu0 %192
        %194 = vrot.lane.b32.xlu0 %v174, 1
        %v195 = vpop.permute.xlu0 %194
        %196 = vrot.lane.b32.xlu0 %v175, 1
        %v197 = vpop.permute.xlu0 %196
        %198 = vrot.lane.b32.xlu0 %v176, 1
        %v199 = vpop.permute.xlu0 %198
        %200 = vrot.lane.b32.xlu0 %v177, 1
        %v201 = vpop.permute.xlu0 %200
        %vm210 = vcmask 154632
        %211 = vst.msk [vmem:[%s140 + $0x2] sm:$0xff] %vm210, %v187
        %212 = vst.msk [vmem:[%s140 + $0xa] sm:$0xff] %vm210, %v189
        %213 = vst.msk [vmem:[%s140 + $0x1a] sm:$0xff] %vm210, %v191
        %214 = vst.msk [vmem:[%s140 + $0x22] sm:$0xff] %vm210, %v193
        %215 = vst.msk [vmem:[%s140 + $0x32] sm:$0xff] %vm210, %v195
        %216 = vst.msk [vmem:[%s140 + $0x3a] sm:$0xff] %vm210, %v197
        %217 = vst.msk [vmem:[%s140 + $0x4a] sm:$0xff] %vm210, %v199
        %218 = vst.msk [vmem:[%s140 + $0x52] sm:$0xff] %vm210, %v201
        %s219 = smul.u32 4, %s15
        %p220 = scmp.lt.s32.totalorder %s219, 7
        %s221 = scalar_select %p220, %s219, 7
        %s222 = smul.addr %s221, 3
        %s223 = smul.addr %s222, 8
        %s224 = scalar_lea.vmem %s1, %s223
        // Predicated region
        $region29: #{center_padding.1} parent=23 // pred_check
          %p225 = pneg %p59
        $region30: #{center_padding.1} parent=23 // pred_check_branch
          %227 = sbr.rel (%p225) target = $region32
        $region31: #{center_padding.1} parent=23 // pred_region
          %s228 = smul.u32 4, %s15
        $region32: #{center_padding.1} parent=23 // pred_fallthru
          _
      $region24: #{center_padding.1} parent=5 // pred_fallthru
        _
      %p229 = scmp.le.s32.totalorder 2, %s10
      // Predicated region
      $region33: #{center_padding.1} parent=5 // pred_check
        %p230 = pneg %p229
      $region34: #{center_padding.1} parent=5 // pred_check_branch
        %232 = sbr.rel (%p230) target = $region36
      $region35: #{center_padding.1} parent=5 // pred_region
        %s233 = ssub.s32 %s10, 2
        // Predicated region
        $region37: #{center_padding.1} parent=35 // pred_check
          %p234 = pneg %p65
        $region38: #{center_padding.1} parent=35 // pred_check_branch
          %236 = sbr.rel (%p234) target = $region40
        $region39: #{center_padding.1} parent=35 // pred_region
          %s237 = smul.u32 4, %s16
          %p238 = scmp.lt.s32.totalorder %s237, 7
          %s239 = scalar_select %p238, %s237, 7
          %s240 = smul.addr %s239, 3
          %s241 = smul.addr %s240, 8
          %s242 = scalar_lea.vmem %s1, %s241
        $region40: #{center_padding.1} parent=35 // pred_fallthru
          _
      $region36: #{center_padding.1} parent=5 // pred_fallthru
        _
    $region6: #{center_padding.1} parent=1 // loop_footer
      %s14 = sadd.s32 1, %s10
    $region7: #{center_padding.1} parent=1 // loop_footer_branch
      %9 = sbr.rel target = $region3
    $region8: #{center_padding.1} parent=1 // loop_exit
      _
    %243 = vsyncpa [#allocation3], 1
    %s244 = scalar_lea.sflag [#allocation3], 1
    %245 = vsyncpa %s244, 1

</llo_original>
